<compile_context>
chip_gen: v7x
topology: tpu7x:2x2x1
jax: 0.10.0
libtpu: 0.0.40
codegen_flags: <defaults>
</compile_context>

<pallas_src>
import math
import functools

import jax
import jax.numpy as jnp
from jax import lax
from jax.experimental import pallas as pl
from jax.experimental.pallas import tpu as pltpu

# dot_general dimension_numbers for x @ W.T (contract last dim of both operands).
_NT_DIMS = (((1,), (1,)), ((), ()))


def mha_kernel(q_ref, k_ref, v_ref, wq_ref, wk_ref, wv_ref, woT_ref,
               o_ref, acc_ref, *, block_b, seq_len, d_k, d_model):
    h = pl.program_id(1)

    @pl.when(h == 0)
    def _():
        acc_ref[...] = jnp.zeros_like(acc_ref)

    m_rows = block_b * seq_len

    # (block_b, S, D) -> (block_b*S, D): leading-dim collapse (layout no-op).
    xq = q_ref[...].reshape(m_rows, d_model).astype(jnp.bfloat16)
    xk = k_ref[...].reshape(m_rows, d_model).astype(jnp.bfloat16)
    xv = v_ref[...].reshape(m_rows, d_model).astype(jnp.bfloat16)

    wq = wq_ref[...].astype(jnp.bfloat16)   # (d_k, D) rows of W_q for this head (pre-scaled)
    wk = wk_ref[...].astype(jnp.bfloat16)
    wv = wv_ref[...].astype(jnp.bfloat16)
    wo = woT_ref[...].astype(jnp.bfloat16)  # (d_k, D) rows of W_o.T for this head

    # Per-head projections: x @ W_h.T, bf16 operands, f32 accumulation.
    qh = lax.dot_general(xq, wq, _NT_DIMS, preferred_element_type=jnp.float32)
    kh = lax.dot_general(xk, wk, _NT_DIMS, preferred_element_type=jnp.float32)
    vh = lax.dot_general(xv, wv, _NT_DIMS, preferred_element_type=jnp.float32)

    qh = qh.reshape(block_b, seq_len, d_k).astype(jnp.bfloat16)
    kh = kh.reshape(block_b, seq_len, d_k).astype(jnp.bfloat16)
    vh = vh.reshape(block_b, seq_len, d_k).astype(jnp.bfloat16)

    # Scaled dot-product attention; the 1/sqrt(d_k) scale is folded into W_q.
    scores = jnp.einsum('bqd,bkd->bqk', qh, kh,
                        preferred_element_type=jnp.float32)      # (block_b, S, S) f32
    m = jnp.max(scores, axis=-1, keepdims=True)
    e = jnp.exp(scores - m)                                      # f32 on the EUP
    denom = jnp.sum(e, axis=-1, keepdims=True)                   # (block_b, S, 1)
    ctx = jnp.einsum('bqk,bkd->bqd', e.astype(jnp.bfloat16), vh,
                     preferred_element_type=jnp.float32)         # (block_b, S, d_k)
    # Deferred softmax normalization on the small (S, d_k) result (EUP reciprocal).
    ctx = ctx * pl.reciprocal(denom, approx=True)

    # Accumulate this head's contribution through W_o:
    #   sum_h ctx_h @ (W_o.T rows of head h)  ==  concat_h(ctx_h) @ W_o.T
    ctx2 = ctx.reshape(m_rows, d_k).astype(jnp.bfloat16)
    acc_ref[...] += jnp.dot(ctx2, wo, preferred_element_type=jnp.float32)

    @pl.when(h == pl.num_programs(1) - 1)
    def _():
        o_ref[...] = acc_ref[...].reshape(block_b, seq_len, d_model).astype(o_ref.dtype)


def multi_head_attention(q, k, v, w_q, w_k, w_v, w_o, *, h_heads):
    B, S, D = q.shape
    assert D % h_heads == 0, "d_model must be divisible by h_heads"
    d_k = D // h_heads
    # Per-head weight blocks are (d_k, D); keep the sublane dim tiling-friendly.
    assert d_k % 8 == 0 or d_k == D, "d_k must be a multiple of 8 for this kernel"

    # Fold the attention scale into W_q once (wrapper-side, f32).
    wq_scaled = w_q.astype(jnp.float32) * jnp.float32(1.0 / math.sqrt(d_k))
    # Pre-transpose W_o so the kernel never transposes a weight tile.
    w_oT = jnp.transpose(w_o)  # (h_heads*d_v, d_model)

    # Batch tile: aim for M = block_b*S >= 128 rows per projection GEMM when B allows.
    target = max(1, min(B, pl.cdiv(128, S)))
    block_b = max(d for d in range(1, target + 1) if B % d == 0)
    n_btiles = B // block_b

    kernel = functools.partial(mha_kernel, block_b=block_b, seq_len=S,
                               d_k=d_k, d_model=D)

    x_spec = pl.BlockSpec((block_b, S, D), lambda b, h: (b, 0, 0))   # resident across heads
    w_spec = pl.BlockSpec((d_k, D), lambda b, h: (h, 0))             # per-head weight rows

    return pl.pallas_call(
        kernel,
        out_shape=jax.ShapeDtypeStruct((B, S, D), q.dtype),
        grid_spec=pltpu.PrefetchScalarGridSpec(
            num_scalar_prefetch=0,
            grid=(n_btiles, h_heads),                 # head (reduction) axis last
            in_specs=[x_spec, x_spec, x_spec, w_spec, w_spec, w_spec, w_spec],
            out_specs=x_spec,
            scratch_shapes=[pltpu.VMEM((block_b * S, D), jnp.float32)],
        ),
        compiler_params=pltpu.CompilerParams(
            dimension_semantics=("parallel", "arbitrary")),
    )(q, k, v, wq_scaled, w_k, w_v, w_oT)


def mha_reference(q, k, v, w_q, w_k, w_v, w_o, *, h_heads):
    """Pure-JAX reference mirroring the PyTorch module (mask=None)."""
    B, S, D = q.shape
    d_k = D // h_heads
    Q = q @ w_q.T
    K = k @ w_k.T
    V = v @ w_v.T
    Q = Q.reshape(B, S, h_heads, d_k).transpose(0, 2, 1, 3)
    K = K.reshape(B, S, h_heads, d_k).transpose(0, 2, 1, 3)
    V = V.reshape(B, S, h_heads, d_k).transpose(0, 2, 1, 3)
    scores = jnp.einsum('bhqd,bhkd->bhqk', Q, K) / math.sqrt(d_k)
    w = jax.nn.softmax(scores, axis=-1)
    attn = jnp.einsum('bhqk,bhkd->bhqd', w, V)
    attn = attn.transpose(0, 2, 1, 3).reshape(B, S, D)
    return attn @ w_o.T


if __name__ == "__main__":
    batch = 2
    seq = 8
    d_model = 32
    h_heads = 4

    key = jax.random.PRNGKey(0)
    kq, kk, kv, kwq, kwk, kwv, kwo = jax.random.split(key, 7)

    q = jax.random.normal(kq, (batch, seq, d_model), dtype=jnp.float32)
    k = jax.random.normal(kk, (batch, seq, d_model), dtype=jnp.float32)
    v = jax.random.normal(kv, (batch, seq, d_model), dtype=jnp.float32)

    # Deterministic "Linear" weights (out_features, in_features), bias=False.
    bound = 1.0 / math.sqrt(d_model)
    w_q = jax.random.uniform(kwq, (d_model, d_model), jnp.float32, -bound, bound)
    w_k = jax.random.uniform(kwk, (d_model, d_model), jnp.float32, -bound, bound)
    w_v = jax.random.uniform(kwv, (d_model, d_model), jnp.float32, -bound, bound)
    w_o = jax.random.uniform(kwo, (d_model, d_model), jnp.float32, -bound, bound)

    out = multi_head_attention(q, k, v, w_q, w_k, w_v, w_o, h_heads=h_heads)
    out = jax.block_until_ready(out)

    ref = mha_reference(q, k, v, w_q, w_k, w_v, w_o, h_heads=h_heads)
    assert out.shape == (batch, seq, d_model)
    # bf16 MXU operands + approx reciprocal -> looser tolerance than pure f32.
    assert jnp.allclose(out, ref, atol=5e-2, rtol=5e-2), "mismatch vs reference"

    print("KERNEL_OK")
</pallas_src>

<mosaic_0001>
module attributes {stable_mosaic.version = 11 : i64} {
  func.func @mha_kernel(%arg0: i32, %arg1: i32, %arg2: memref<2x8x32xf32, #tpu.memory_space<vmem>>, %arg3: memref<2x8x32xf32, #tpu.memory_space<vmem>>, %arg4: memref<2x8x32xf32, #tpu.memory_space<vmem>>, %arg5: memref<8x32xf32, #tpu.memory_space<vmem>>, %arg6: memref<8x32xf32, #tpu.memory_space<vmem>>, %arg7: memref<8x32xf32, #tpu.memory_space<vmem>>, %arg8: memref<8x32xf32, #tpu.memory_space<vmem>>, %arg9: memref<2x8x32xf32, #tpu.memory_space<vmem>>, %arg10: memref<16x32xf32, #tpu.memory_space<vmem>>) attributes {dimension_semantics = [#tpu.dimension_semantics<parallel>, #tpu.dimension_semantics<arbitrary>], iteration_bounds = array<i64: 1, 4>, scalar_prefetch = 0 : i64, scratch_operands = 1 : i64, tpu.core_type = #tpu.core_type<tc>, window_params = [{transform_indices = @transform_0, window_bounds = array<i64: 2, 8, 32>}, {transform_indices = @transform_1, window_bounds = array<i64: 2, 8, 32>}, {transform_indices = @transform_2, window_bounds = array<i64: 2, 8, 32>}, {transform_indices = @transform_3, window_bounds = array<i64: 8, 32>}, {transform_indices = @transform_4, window_bounds = array<i64: 8, 32>}, {transform_indices = @transform_5, window_bounds = array<i64: 8, 32>}, {transform_indices = @transform_6, window_bounds = array<i64: 8, 32>}, {transform_indices = @transform_7, window_bounds = array<i64: 2, 8, 32>}]} {
    %c0_i32 = arith.constant 0 : i32
    %0 = arith.cmpi eq, %arg1, %c0_i32 : i32
    %1 = arith.extui %0 : i1 to i32
    %c0_i32_0 = arith.constant 0 : i32
    %2 = arith.cmpi ne, %1, %c0_i32_0 : i32
    scf.if %2 {
      %cst_29 = arith.constant 0.000000e+00 : f32
      %51 = vector.broadcast %cst_29 : f32 to vector<16x32xf32>
      %c0_30 = arith.constant 0 : index
      %c0_31 = arith.constant 0 : index
      %52 = vector.load %arg10[%c0_30, %c0_31] : memref<16x32xf32, #tpu.memory_space<vmem>>, vector<16x32xf32>
      tpu.vector_store %arg10[%c0_30, %c0_31], %51 {strides = array<i32>} : memref<16x32xf32, #tpu.memory_space<vmem>>, vector<16x32xf32>,
    } else {
    }
    %c0 = arith.constant 0 : index
    %c0_1 = arith.constant 0 : index
    %c0_2 = arith.constant 0 : index
    %3 = vector.load %arg2[%c0, %c0_1, %c0_2] : memref<2x8x32xf32, #tpu.memory_space<vmem>>, vector<2x8x32xf32>
    %4 = vector.shape_cast %3 : vector<2x8x32xf32> to vector<16x32xf32>
    %5 = arith.truncf %4 : vector<16x32xf32> to vector<16x32xbf16>
    %c0_3 = arith.constant 0 : index
    %c0_4 = arith.constant 0 : index
    %c0_5 = arith.constant 0 : index
    %6 = vector.load %arg3[%c0_3, %c0_4, %c0_5] : memref<2x8x32xf32, #tpu.memory_space<vmem>>, vector<2x8x32xf32>
    %7 = vector.shape_cast %6 : vector<2x8x32xf32> to vector<16x32xf32>
    %8 = arith.truncf %7 : vector<16x32xf32> to vector<16x32xbf16>
    %c0_6 = arith.constant 0 : index
    %c0_7 = arith.constant 0 : index
    %c0_8 = arith.constant 0 : index
    %9 = vector.load %arg4[%c0_6, %c0_7, %c0_8] : memref<2x8x32xf32, #tpu.memory_space<vmem>>, vector<2x8x32xf32>
    %10 = vector.shape_cast %9 : vector<2x8x32xf32> to vector<16x32xf32>
    %11 = arith.truncf %10 : vector<16x32xf32> to vector<16x32xbf16>
    %c0_9 = arith.constant 0 : index
    %c0_10 = arith.constant 0 : index
    %12 = vector.load %arg5[%c0_9, %c0_10] : memref<8x32xf32, #tpu.memory_space<vmem>>, vector<8x32xf32>
    %13 = arith.truncf %12 : vector<8x32xf32> to vector<8x32xbf16>
    %c0_11 = arith.constant 0 : index
    %c0_12 = arith.constant 0 : index
    %14 = vector.load %arg6[%c0_11, %c0_12] : memref<8x32xf32, #tpu.memory_space<vmem>>, vector<8x32xf32>
    %15 = arith.truncf %14 : vector<8x32xf32> to vector<8x32xbf16>
    %c0_13 = arith.constant 0 : index
    %c0_14 = arith.constant 0 : index
    %16 = vector.load %arg7[%c0_13, %c0_14] : memref<8x32xf32, #tpu.memory_space<vmem>>, vector<8x32xf32>
    %17 = arith.truncf %16 : vector<8x32xf32> to vector<8x32xbf16>
    %c0_15 = arith.constant 0 : index
    %c0_16 = arith.constant 0 : index
    %18 = vector.load %arg8[%c0_15, %c0_16] : memref<8x32xf32, #tpu.memory_space<vmem>>, vector<8x32xf32>
    %19 = arith.truncf %18 : vector<8x32xf32> to vector<8x32xbf16>
    %cst = arith.constant dense<0.000000e+00> : vector<16x8xf32>
    %20 = tpu.matmul %5, %13, %cst {dimension_numbers = #tpu.dot_dimension_numbers<[1], [1], [0], [0], [0, 0, 1, 0], [], []>} : vector<16x32xbf16>, vector<8x32xbf16>, vector<16x8xf32> -> vector<16x8xf32>
    %cst_17 = arith.constant dense<0.000000e+00> : vector<16x8xf32>
    %21 = tpu.matmul %8, %15, %cst_17 {dimension_numbers = #tpu.dot_dimension_numbers<[1], [1], [0], [0], [0, 0, 1, 0], [], []>} : vector<16x32xbf16>, vector<8x32xbf16>, vector<16x8xf32> -> vector<16x8xf32>
    %cst_18 = arith.constant dense<0.000000e+00> : vector<16x8xf32>
    %22 = tpu.matmul %11, %17, %cst_18 {dimension_numbers = #tpu.dot_dimension_numbers<[1], [1], [0], [0], [0, 0, 1, 0], [], []>} : vector<16x32xbf16>, vector<8x32xbf16>, vector<16x8xf32> -> vector<16x8xf32>
    %23 = vector.shape_cast %20 : vector<16x8xf32> to vector<2x8x8xf32>
    %24 = arith.truncf %23 : vector<2x8x8xf32> to vector<2x8x8xbf16>
    %25 = vector.shape_cast %21 : vector<16x8xf32> to vector<2x8x8xf32>
    %26 = arith.truncf %25 : vector<2x8x8xf32> to vector<2x8x8xbf16>
    %27 = vector.shape_cast %22 : vector<16x8xf32> to vector<2x8x8xf32>
    %28 = arith.truncf %27 : vector<2x8x8xf32> to vector<2x8x8xbf16>
    "tpu.trace_start"() <{level = 10 : i32, message = "bqd,bkd->bqk"}> : () -> ()
    %cst_19 = arith.constant dense<0.000000e+00> : vector<2x8x8xf32>
    %29 = tpu.matmul %24, %26, %cst_19 {dimension_numbers = #tpu.dot_dimension_numbers<[2], [2], [1], [1], [0, 0, 0, 1, 1, 1], [0], [0]>} : vector<2x8x8xbf16>, vector<2x8x8xbf16>, vector<2x8x8xf32> -> vector<2x8x8xf32>
    "tpu.trace_stop"() : () -> ()
    %cst_20 = arith.constant dense<0xFF800000> : vector<2x8xf32>
    %30 = vector.multi_reduction <maximumf>, %29, %cst_20 [2] : vector<2x8x8xf32> to vector<2x8xf32>
    %31 = vector.shape_cast %30 : vector<2x8xf32> to vector<2x8x1xf32>
    %32 = vector.broadcast %31 : vector<2x8x1xf32> to vector<2x8x8xf32>
    %33 = arith.subf %29, %32 : vector<2x8x8xf32>
    %34 = math.exp %33 : vector<2x8x8xf32>
    %cst_21 = arith.constant dense<0.000000e+00> : vector<2x8xf32>
    %35 = vector.multi_reduction <add>, %34, %cst_21 [2] : vector<2x8x8xf32> to vector<2x8xf32>
    %36 = vector.shape_cast %35 : vector<2x8xf32> to vector<2x8x1xf32>
    %37 = arith.truncf %34 : vector<2x8x8xf32> to vector<2x8x8xbf16>
    "tpu.trace_start"() <{level = 10 : i32, message = "bqk,bkd->bqd"}> : () -> ()
    %cst_22 = arith.constant dense<0.000000e+00> : vector<2x8x8xf32>
    %38 = tpu.matmul %37, %28, %cst_22 {dimension_numbers = #tpu.dot_dimension_numbers<[2], [1], [1], [2], [0, 0, 0, 1, 1, 2], [0], [0]>} : vector<2x8x8xbf16>, vector<2x8x8xbf16>, vector<2x8x8xf32> -> vector<2x8x8xf32>
    "tpu.trace_stop"() : () -> ()
    %39 = tpu.reciprocal %36 {approx = true} : vector<2x8x1xf32> -> vector<2x8x1xf32>
    %40 = vector.broadcast %39 : vector<2x8x1xf32> to vector<2x8x8xf32>
    %41 = arith.mulf %38, %40 : vector<2x8x8xf32>
    %42 = vector.shape_cast %41 : vector<2x8x8xf32> to vector<16x8xf32>
    %43 = arith.truncf %42 : vector<16x8xf32> to vector<16x8xbf16>
    %c0_23 = arith.constant 0 : index
    %c0_24 = arith.constant 0 : index
    %44 = vector.load %arg10[%c0_23, %c0_24] : memref<16x32xf32, #tpu.memory_space<vmem>>, vector<16x32xf32>
    %cst_25 = arith.constant dense<0.000000e+00> : vector<16x32xf32>
    %45 = tpu.matmul %43, %19, %cst_25 {dimension_numbers = #tpu.dot_dimension_numbers<[1], [0], [0], [1], [0, 0, 1, 1], [], []>} : vector<16x8xbf16>, vector<8x32xbf16>, vector<16x32xf32> -> vector<16x32xf32>
    %46 = arith.addf %44, %45 : vector<16x32xf32>
    %c0_26 = arith.constant 0 : index
    %c0_27 = arith.constant 0 : index
    %47 = vector.load %arg10[%c0_26, %c0_27] : memref<16x32xf32, #tpu.memory_space<vmem>>, vector<16x32xf32>
    tpu.vector_store %arg10[%c0_26, %c0_27], %46 {strides = array<i32>} : memref<16x32xf32, #tpu.memory_space<vmem>>, vector<16x32xf32>,
    %c3_i32 = arith.constant 3 : i32
    %48 = arith.cmpi eq, %arg1, %c3_i32 : i32
    %49 = arith.extui %48 : i1 to i32
    %c0_i32_28 = arith.constant 0 : i32
    %50 = arith.cmpi ne, %49, %c0_i32_28 : i32
    scf.if %50 {
      %c0_29 = arith.constant 0 : index
      %c0_30 = arith.constant 0 : index
      %51 = vector.load %arg10[%c0_29, %c0_30] : memref<16x32xf32, #tpu.memory_space<vmem>>, vector<16x32xf32>
      %52 = vector.shape_cast %51 : vector<16x32xf32> to vector<2x8x32xf32>
      %c0_31 = arith.constant 0 : index
      %c0_32 = arith.constant 0 : index
      %c0_33 = arith.constant 0 : index
      %53 = vector.load %arg9[%c0_31, %c0_32, %c0_33] : memref<2x8x32xf32, #tpu.memory_space<vmem>>, vector<2x8x32xf32>
      tpu.vector_store %arg9[%c0_31, %c0_32, %c0_33], %52 {strides = array<i32>} : memref<2x8x32xf32, #tpu.memory_space<vmem>>, vector<2x8x32xf32>,
    } else {
    }
    return
  }
  func.func @transform_0(%arg0: i32, %arg1: i32) -> (i32, i32, i32) {
    %c0_i32 = arith.constant 0 : i32
    %c0_i32_0 = arith.constant 0 : i32
    %c0_i32_1 = arith.constant 0 : i32
    return %arg0, %c0_i32, %c0_i32_0 : i32, i32, i32
  }
  func.func @transform_1(%arg0: i32, %arg1: i32) -> (i32, i32, i32) {
    %c0_i32 = arith.constant 0 : i32
    %c0_i32_0 = arith.constant 0 : i32
    %c0_i32_1 = arith.constant 0 : i32
    return %arg0, %c0_i32, %c0_i32_0 : i32, i32, i32
  }
  func.func @transform_2(%arg0: i32, %arg1: i32) -> (i32, i32, i32) {
    %c0_i32 = arith.constant 0 : i32
    %c0_i32_0 = arith.constant 0 : i32
    %c0_i32_1 = arith.constant 0 : i32
    return %arg0, %c0_i32, %c0_i32_0 : i32, i32, i32
  }
  func.func @transform_3(%arg0: i32, %arg1: i32) -> (i32, i32) {
    %c0_i32 = arith.constant 0 : i32
    %c0_i32_0 = arith.constant 0 : i32
    return %arg1, %c0_i32 : i32, i32
  }
  func.func @transform_4(%arg0: i32, %arg1: i32) -> (i32, i32) {
    %c0_i32 = arith.constant 0 : i32
    %c0_i32_0 = arith.constant 0 : i32
    return %arg1, %c0_i32 : i32, i32
  }
  func.func @transform_5(%arg0: i32, %arg1: i32) -> (i32, i32) {
    %c0_i32 = arith.constant 0 : i32
    %c0_i32_0 = arith.constant 0 : i32
    return %arg1, %c0_i32 : i32, i32
  }
  func.func @transform_6(%arg0: i32, %arg1: i32) -> (i32, i32) {
    %c0_i32 = arith.constant 0 : i32
    %c0_i32_0 = arith.constant 0 : i32
    return %arg1, %c0_i32 : i32, i32
  }
  func.func @transform_7(%arg0: i32, %arg1: i32) -> (i32, i32, i32) {
    %c0_i32 = arith.constant 0 : i32
    %c0_i32_0 = arith.constant 0 : i32
    %c0_i32_1 = arith.constant 0 : i32
    return %arg0, %c0_i32, %c0_i32_0 : i32, i32, i32
  }
}

</mosaic_0001>

<llo_original>
// kernel: tpu_custom_call.1
$region0: #{tpu_custom_call.1}
  #allocation0 [shape = 'u32[]', space=smem, size = 0x4, offset = 0x4, fixed_abs, tag = 'smem constant byte address 0x4 - core index']
  #allocation1 [shape = 'u32[144,128]{1,0:T(1,128)}', space=vmem, size = 0x12000, scoped, tag = 'internal scratch']
  #allocation2 [shape = 'f32[16,32]{1,0:T(8,128)}', space=vmem, size = 0x2000, scoped, tag = 'scratch operand']
  %s0 = inlined_call_operand.hbm [shape: f32[2,8,32], index: 0, kind: input, shape index: {}]
  %s1 = inlined_call_operand.hbm [shape: f32[2,8,32], index: 1, kind: input, shape index: {}]
  %s2 = inlined_call_operand.hbm [shape: f32[2,8,32], index: 2, kind: input, shape index: {}]
  %s3 = inlined_call_operand.hbm [shape: f32[32,32], index: 3, kind: input, shape index: {}]
  %s4 = inlined_call_operand.hbm [shape: f32[32,32], index: 4, kind: input, shape index: {}]
  %s5 = inlined_call_operand.hbm [shape: f32[32,32], index: 5, kind: input, shape index: {}]
  %s6 = inlined_call_operand.hbm [shape: f32[32,32], index: 6, kind: input, shape index: {}]
  %s7 = inlined_call_operand.hbm [shape: f32[2,8,32], index: 7, kind: output, shape index: {}]
  %s8 = sld [smem:[#allocation0]]
  $region97: #{tpu_custom_call.1} parent=0
    _
  %s10 = ssub.s32 1, %s8
  %s11 = scalar_select 0, %s10, %s8
  $region1: #{tpu_custom_call.1} parent=0
    #allocation3 [shape = 'u8[8192]{0}', space=vmem, size = 0x2000, scoped, tag = 'input window, operand 0, single buffered']
    #allocation4 [shape = 's32[2]{0}', space=sflag, size = 0x8, scoped, tag = 'scoped memory for tpu_custom_call.1']
    #allocation5 [shape = 's32[2]{0}', space=sflag, size = 0x8, scoped, tag = 'scoped memory for tpu_custom_call.1']
    #allocation6 [shape = 'u8[8192]{0}', space=vmem, size = 0x2000, scoped, tag = 'input window, operand 1, single buffered']
    #allocation7 [shape = 's32[1]{0}', space=sflag, size = 0x4, scoped, tag = 'scoped memory for tpu_custom_call.1']
    #allocation8 [shape = 'u8[8192]{0}', space=vmem, size = 0x2000, scoped, tag = 'input window, operand 2, single buffered']
    #allocation9 [shape = 'u8[8192]{0}', space=vmem, size = 0x2000, scoped, tag = 'input window, operand 3']
    #allocation10 [shape = 's32[2]{0}', space=sflag, size = 0x8, scoped, tag = 'scoped memory for tpu_custom_call.1']
    #allocation11 [shape = 'u8[8192]{0}', space=vmem, size = 0x2000, scoped, tag = 'input window, operand 4']
    #allocation12 [shape = 'u8[8192]{0}', space=vmem, size = 0x2000, scoped, tag = 'input window, operand 5']
    #allocation13 [shape = 's32[2]{0}', space=sflag, size = 0x8, scoped, tag = 'scoped memory for tpu_custom_call.1']
    #allocation14 [shape = 'u8[8192]{0}', space=vmem, size = 0x2000, scoped, tag = 'input window, operand 6']
    #allocation15 [shape = 'u8[8192]{0}', space=vmem, size = 0x2000, scoped, tag = 'output window, operand 0, single buffered']
    %12 = vsyncpa [#allocation4], 0
    %13 = vsyncpa [#allocation7], 0
    %14 = vsyncpa [#allocation10], 0
    %s15 = scalar_lea.sflag [#allocation10], 1
    %16 = vsyncpa %s15, 0
    %17 = vsyncpa [#allocation13], 0
    %s18 = scalar_lea.sflag [#allocation13], 1
    %19 = vsyncpa %s18, 0
    %20 = vsyncpa [#allocation5], 0
    loop: start=0, step=1, limit=6
    $region2: #{tpu_custom_call.1} parent=1 // loop_pre_header
      _
    $region3: #{tpu_custom_call.1} parent=1 // loop_header
      %s22 = sphi 0, %s26
      %p23 = scmp.ge.s32.totalorder %s22, 6
      %s29 = sphi 0, %s41
      %s30 = sphi 0, %s37
      %s31 = sphi 0, %s29
      %s32 = sphi 0, %s30
      %s33 = sphi 0, %s31
      %s34 = sphi 0, %s32
      %s44 = sphi 0, %s46
      %s47 = sphi 0, %s44
      %s48 = sphi 0, %s47
      %s64 = sphi 0, %s48
      %s70 = sphi 0, %s72
      %s73 = sphi 0, %s70
      %s74 = sphi 0, %s73
      %s90 = sphi 0, %s74
      %s96 = sphi 0, %s98
      %s99 = sphi 0, %s96
      %s100 = sphi 0, %s99
      %s116 = sphi 0, %s100
      %s122 = sphi 0, %s124
      %s125 = sphi 0, %s122
      %s126 = sphi 0, %s125
      %s142 = sphi 0, %s126
      %s148 = sphi 0, %s150
      %s151 = sphi 0, %s148
      %s152 = sphi 0, %s151
      %s168 = sphi 0, %s152
      %s174 = sphi 0, %s176
      %s177 = sphi 0, %s174
      %s178 = sphi 0, %s177
      %s194 = sphi 0, %s178
      %s200 = sphi 0, %s202
      %s203 = sphi 0, %s200
      %s204 = sphi 0, %s203
      %s220 = sphi 0, %s204
      %s226 = sphi 0, %s228
      %s229 = sphi 0, %s226
      %s230 = sphi 0, %s229
      %s246 = sphi 0, %s230
    $region4: #{tpu_custom_call.1} parent=1 // loop_header_branch
      %25 = sbr.rel (%p23) target = $region8
    $region5: #{tpu_custom_call.1} parent=1 // loop_body
      %s27 = ssub.s32 %s22, 1
      %s28 = ssub.s32 %s22, 2
      %s35 = sadd.s32 1, %s30
      %p36 = scmp.ge.s32.totalorder %s35, 4
      %s37 = scalar_select %p36, 0, %s35
      %s38 = sadd.s32 1, %s29
      %s39 = scalar_select %p36, %s38, %s29
      %p40 = scmp.ge.s32.totalorder %s39, 1
      %s41 = scalar_select %p40, 0, %s39
      %s42 = ssub.s32 %s29, %s41
      %p43 = scmp.eq.s32.totalorder %s42, 0
      %s45 = sadd.s32 %s44, 1
      %s46 = scalar_select %p43, %s44, %s45
      %p49 = pneg %p43
      %p50 = scmp.eq.s32.totalorder %s22, 3
      %p51 = por %p49, %p50
      %p52 = scmp.ne.s32.totalorder %s44, %s47
      %p53 = scmp.eq.s32.totalorder %s22, 0
      %p54 = por %p52, %p53
      %p55 = scmp.ne.s32.totalorder %s44, %s47
      %p56 = scmp.eq.s32.totalorder %s27, 3
      %p57 = por %p55, %p56
      %p58 = scmp.ne.s32.totalorder %s47, %s48
      %p59 = scmp.eq.s32.totalorder %s27, 0
      %p60 = por %p58, %p59
      %p61 = scmp.ne.s32.totalorder %s47, %s48
      %p62 = scmp.eq.s32.totalorder %s28, 3
      %p63 = por %p61, %p62
      %p65 = scmp.ne.s32.totalorder %s48, %s64
      %p66 = scmp.eq.s32.totalorder %s28, 0
      %p67 = por %p65, %p66
      %s68 = ssub.s32 %s29, %s41
      %p69 = scmp.eq.s32.totalorder %s68, 0
      %s71 = sadd.s32 %s70, 1
      %s72 = scalar_select %p69, %s70, %s71
      %p75 = pneg %p69
      %p76 = scmp.eq.s32.totalorder %s22, 3
      %p77 = por %p75, %p76
      %p78 = scmp.ne.s32.totalorder %s70, %s73
      %p79 = scmp.eq.s32.totalorder %s22, 0
      %p80 = por %p78, %p79
      %p81 = scmp.ne.s32.totalorder %s70, %s73
      %p82 = scmp.eq.s32.totalorder %s27, 3
      %p83 = por %p81, %p82
      %p84 = scmp.ne.s32.totalorder %s73, %s74
      %p85 = scmp.eq.s32.totalorder %s27, 0
      %p86 = por %p84, %p85
      %p87 = scmp.ne.s32.totalorder %s73, %s74
      %p88 = scmp.eq.s32.totalorder %s28, 3
      %p89 = por %p87, %p88
      %p91 = scmp.ne.s32.totalorder %s74, %s90
      %p92 = scmp.eq.s32.totalorder %s28, 0
      %p93 = por %p91, %p92
      %s94 = ssub.s32 %s29, %s41
      %p95 = scmp.eq.s32.totalorder %s94, 0
      %s97 = sadd.s32 %s96, 1
      %s98 = scalar_select %p95, %s96, %s97
      %p101 = pneg %p95
      %p102 = scmp.eq.s32.totalorder %s22, 3
      %p103 = por %p101, %p102
      %p104 = scmp.ne.s32.totalorder %s96, %s99
      %p105 = scmp.eq.s32.totalorder %s22, 0
      %p106 = por %p104, %p105
      %p107 = scmp.ne.s32.totalorder %s96, %s99
      %p108 = scmp.eq.s32.totalorder %s27, 3
      %p109 = por %p107, %p108
      %p110 = scmp.ne.s32.totalorder %s99, %s100
      %p111 = scmp.eq.s32.totalorder %s27, 0
      %p112 = por %p110, %p111
      %p113 = scmp.ne.s32.totalorder %s99, %s100
      %p114 = scmp.eq.s32.totalorder %s28, 3
      %p115 = por %p113, %p114
      %p117 = scmp.ne.s32.totalorder %s100, %s116
      %p118 = scmp.eq.s32.totalorder %s28, 0
      %p119 = por %p117, %p118
      %s120 = ssub.s32 %s30, %s37
      %p121 = scmp.eq.s32.totalorder %s120, 0
      %s123 = sadd.s32 %s122, 1
      %s124 = scalar_select %p121, %s122, %s123
      %p127 = pneg %p121
      %p128 = scmp.eq.s32.totalorder %s22, 3
      %p129 = por %p127, %p128
      %p130 = scmp.ne.s32.totalorder %s122, %s125
      %p131 = scmp.eq.s32.totalorder %s22, 0
      %p132 = por %p130, %p131
      %p133 = scmp.ne.s32.totalorder %s122, %s125
      %p134 = scmp.eq.s32.totalorder %s27, 3
      %p135 = por %p133, %p134
      %p136 = scmp.ne.s32.totalorder %s125, %s126
      %p137 = scmp.eq.s32.totalorder %s27, 0
      %p138 = por %p136, %p137
      %p139 = scmp.ne.s32.totalorder %s125, %s126
      %p140 = scmp.eq.s32.totalorder %s28, 3
      %p141 = por %p139, %p140
      %p143 = scmp.ne.s32.totalorder %s126, %s142
      %p144 = scmp.eq.s32.totalorder %s28, 0
      %p145 = por %p143, %p144
      %s146 = ssub.s32 %s30, %s37
      %p147 = scmp.eq.s32.totalorder %s146, 0
      %s149 = sadd.s32 %s148, 1
      %s150 = scalar_select %p147, %s148, %s149
      %p153 = pneg %p147
      %p154 = scmp.eq.s32.totalorder %s22, 3
      %p155 = por %p153, %p154
      %p156 = scmp.ne.s32.totalorder %s148, %s151
      %p157 = scmp.eq.s32.totalorder %s22, 0
      %p158 = por %p156, %p157
      %p159 = scmp.ne.s32.totalorder %s148, %s151
      %p160 = scmp.eq.s32.totalorder %s27, 3
      %p161 = por %p159, %p160
      %p162 = scmp.ne.s32.totalorder %s151, %s152
      %p163 = scmp.eq.s32.totalorder %s27, 0
      %p164 = por %p162, %p163
      %p165 = scmp.ne.s32.totalorder %s151, %s152
      %p166 = scmp.eq.s32.totalorder %s28, 3
      %p167 = por %p165, %p166
      %p169 = scmp.ne.s32.totalorder %s152, %s168
      %p170 = scmp.eq.s32.totalorder %s28, 0
      %p171 = por %p169, %p170
      %s172 = ssub.s32 %s30, %s37
      %p173 = scmp.eq.s32.totalorder %s172, 0
      %s175 = sadd.s32 %s174, 1
      %s176 = scalar_select %p173, %s174, %s175
      %p179 = pneg %p173
      %p180 = scmp.eq.s32.totalorder %s22, 3
      %p181 = por %p179, %p180
      %p182 = scmp.ne.s32.totalorder %s174, %s177
      %p183 = scmp.eq.s32.totalorder %s22, 0
      %p184 = por %p182, %p183
      %p185 = scmp.ne.s32.totalorder %s174, %s177
      %p186 = scmp.eq.s32.totalorder %s27, 3
      %p187 = por %p185, %p186
      %p188 = scmp.ne.s32.totalorder %s177, %s178
      %p189 = scmp.eq.s32.totalorder %s27, 0
      %p190 = por %p188, %p189
      %p191 = scmp.ne.s32.totalorder %s177, %s178
      %p192 = scmp.eq.s32.totalorder %s28, 3
      %p193 = por %p191, %p192
      %p195 = scmp.ne.s32.totalorder %s178, %s194
      %p196 = scmp.eq.s32.totalorder %s28, 0
      %p197 = por %p195, %p196
      %s198 = ssub.s32 %s30, %s37
      %p199 = scmp.eq.s32.totalorder %s198, 0
      %s201 = sadd.s32 %s200, 1
      %s202 = scalar_select %p199, %s200, %s201
      %p205 = pneg %p199
      %p206 = scmp.eq.s32.totalorder %s22, 3
      %p207 = por %p205, %p206
      %p208 = scmp.ne.s32.totalorder %s200, %s203
      %p209 = scmp.eq.s32.totalorder %s22, 0
      %p210 = por %p208, %p209
      %p211 = scmp.ne.s32.totalorder %s200, %s203
      %p212 = scmp.eq.s32.totalorder %s27, 3
      %p213 = por %p211, %p212
      %p214 = scmp.ne.s32.totalorder %s203, %s204
      %p215 = scmp.eq.s32.totalorder %s27, 0
      %p216 = por %p214, %p215
      %p217 = scmp.ne.s32.totalorder %s203, %s204
      %p218 = scmp.eq.s32.totalorder %s28, 3
      %p219 = por %p217, %p218
      %p221 = scmp.ne.s32.totalorder %s204, %s220
      %p222 = scmp.eq.s32.totalorder %s28, 0
      %p223 = por %p221, %p222
      %s224 = ssub.s32 %s29, %s41
      %p225 = scmp.eq.s32.totalorder %s224, 0
      %s227 = sadd.s32 %s226, 1
      %s228 = scalar_select %p225, %s226, %s227
      %p231 = pneg %p225
      %p232 = scmp.eq.s32.totalorder %s22, 3
      %p233 = por %p231, %p232
      %p234 = scmp.ne.s32.totalorder %s226, %s229
      %p235 = scmp.eq.s32.totalorder %s22, 0
      %p236 = por %p234, %p235
      %p237 = scmp.ne.s32.totalorder %s226, %s229
      %p238 = scmp.eq.s32.totalorder %s27, 3
      %p239 = por %p237, %p238
      %p240 = scmp.ne.s32.totalorder %s229, %s230
      %p241 = scmp.eq.s32.totalorder %s27, 0
      %p242 = por %p240, %p241
      %p243 = scmp.ne.s32.totalorder %s229, %s230
      %p244 = scmp.eq.s32.totalorder %s28, 3
      %p245 = por %p243, %p244
      %p247 = scmp.ne.s32.totalorder %s230, %s246
      %p248 = scmp.eq.s32.totalorder %s28, 0
      %p249 = por %p247, %p248
      %p250 = scmp.le.s32.totalorder 1, %s22
      %p251 = scmp.lt.s32.totalorder %s22, 5
      %p252 = pnand %p250, %p251
      %p253 = pneg %p252
      // Predicated region
      $region9: #{tpu_custom_call.1} parent=5 // pred_check
        _
      $region10: #{tpu_custom_call.1} parent=5 // pred_check_branch
        %255 = sbr.rel (%p252) target = $region12
      $region11: #{tpu_custom_call.1} parent=5 // pred_region
        %s256 = ssub.s32 %s22, 1
        // Predicated region
        $region13: #{tpu_custom_call.1} parent=11 // pred_check
          %p257 = pneg %p60
        $region14: #{tpu_custom_call.1} parent=11 // pred_check_branch
          %259 = sbr.rel (%p257) target = $region16
        $region15: #{tpu_custom_call.1} parent=11 // pred_region
          %s260 = smul.u32 2, %s31
          %s262 = ssub.s32 256, 256
          %263 = vsyncadd [#allocation4], %s262
          %s264 = smul.addr %s260, 128
          %s265 = scalar_lea.hbm %s0, %s264
          %s266 = sshll.u32 [#allocation3], 4
          %s267 = int_to_ptr.vmem [resolvable:$true] %s266
          %272 = dma.hbm_to_vmem [thread:$0]  %s265, 256, %s267, [#allocation4], 128, 128, 8
        $region16: #{tpu_custom_call.1} parent=11 // pred_fallthru
          _
        // Predicated region
        $region17: #{tpu_custom_call.1} parent=11 // pred_check
          %p273 = pneg %p86
        $region18: #{tpu_custom_call.1} parent=11 // pred_check_branch
          %275 = sbr.rel (%p273) target = $region20
        $region19: #{tpu_custom_call.1} parent=11 // pred_region
          %s276 = smul.u32 2, %s31
          %s278 = ssub.s32 256, 256
          %279 = vsyncadd [#allocation7], %s278
          %s280 = smul.addr %s276, 128
          %s281 = scalar_lea.hbm %s1, %s280
          %s282 = sshll.u32 [#allocation6], 4
          %s283 = int_to_ptr.vmem [resolvable:$true] %s282
          %288 = dma.hbm_to_vmem [thread:$0]  %s281, 256, %s283, [#allocation7], 128, 128, 8
        $region20: #{tpu_custom_call.1} parent=11 // pred_fallthru
          _
        // Predicated region
        $region21: #{tpu_custom_call.1} parent=11 // pred_check
          %p289 = pneg %p112
        $region22: #{tpu_custom_call.1} parent=11 // pred_check_branch
          %291 = sbr.rel (%p289) target = $region24
        $region23: #{tpu_custom_call.1} parent=11 // pred_region
          %s292 = smul.u32 2, %s31
          %s294 = ssub.s32 256, 256
          %295 = vsyncadd [#allocation7], %s294
          %s296 = smul.addr %s292, 128
          %s297 = scalar_lea.hbm %s2, %s296
          %s298 = sshll.u32 [#allocation8], 4
          %s299 = int_to_ptr.vmem [resolvable:$true] %s298
          %304 = dma.hbm_to_vmem [thread:$0]  %s297, 256, %s299, [#allocation7], 128, 128, 8
        $region24: #{tpu_custom_call.1} parent=11 // pred_fallthru
          _
      $region12: #{tpu_custom_call.1} parent=5 // pred_fallthru
        _
      %p305 = scmp.lt.s32.totalorder %s22, 4
      // Predicated region
      $region25: #{tpu_custom_call.1} parent=5 // pred_check
        %p306 = pneg %p305
      $region26: #{tpu_custom_call.1} parent=5 // pred_check_branch
        %308 = sbr.rel (%p306) target = $region28
      $region27: #{tpu_custom_call.1} parent=5 // pred_region
        // Predicated region
        $region29: #{tpu_custom_call.1} parent=27 // pred_check
          %p309 = pneg %p132
        $region30: #{tpu_custom_call.1} parent=27 // pred_check_branch
          %311 = sbr.rel (%p309) target = $region32
        $region31: #{tpu_custom_call.1} parent=27 // pred_region
          %s312 = sand.u32 %s22, 1
          %s313 = scalar_lea.sflag [#allocation10], %s312
          %s314 = sand.u32 %s122, 1
          %s315 = smul.addr %s314, 8
          %s316 = scalar_lea.vmem [#allocation9], %s315
          %s318 = ssub.s32 128, 128
          %319 = vsyncadd %s313, %s318
          %s320 = smul.addr %s30, 128
          %s321 = scalar_lea.hbm %s3, %s320
          %s323 = sshll.u32 %s316, 4
          %s324 = int_to_ptr.vmem [resolvable:$true] %s323
          %326 = dma.hbm_to_vmem [thread:$0]  %s321, 128, %s324, %s313
        $region32: #{tpu_custom_call.1} parent=27 // pred_fallthru
          _
        // Predicated region
        $region33: #{tpu_custom_call.1} parent=27 // pred_check
          %p327 = pneg %p158
        $region34: #{tpu_custom_call.1} parent=27 // pred_check_branch
          %329 = sbr.rel (%p327) target = $region36
        $region35: #{tpu_custom_call.1} parent=27 // pred_region
          %s330 = sand.u32 %s22, 1
          %s331 = scalar_lea.sflag [#allocation10], %s330
          %s332 = sand.u32 %s148, 1
          %s333 = smul.addr %s332, 8
          %s334 = scalar_lea.vmem [#allocation11], %s333
          %s336 = ssub.s32 128, 128
          %337 = vsyncadd %s331, %s336
          %s338 = smul.addr %s30, 128
          %s339 = scalar_lea.hbm %s4, %s338
          %s341 = sshll.u32 %s334, 4
          %s342 = int_to_ptr.vmem [resolvable:$true] %s341
          %344 = dma.hbm_to_vmem [thread:$0]  %s339, 128, %s342, %s331
        $region36: #{tpu_custom_call.1} parent=27 // pred_fallthru
          _
        // Predicated region
        $region37: #{tpu_custom_call.1} parent=27 // pred_check
          %p345 = pneg %p184
        $region38: #{tpu_custom_call.1} parent=27 // pred_check_branch
          %347 = sbr.rel (%p345) target = $region40
        $region39: #{tpu_custom_call.1} parent=27 // pred_region
          %s348 = sand.u32 %s22, 1
          %s349 = scalar_lea.sflag [#allocation13], %s348
          %s350 = sand.u32 %s174, 1
          %s351 = smul.addr %s350, 8
          %s352 = scalar_lea.vmem [#allocation12], %s351
          %s354 = ssub.s32 128, 128
          %355 = vsyncadd %s349, %s354
          %s356 = smul.addr %s30, 128
          %s357 = scalar_lea.hbm %s5, %s356
          %s359 = sshll.u32 %s352, 4
          %s360 = int_to_ptr.vmem [resolvable:$true] %s359
          %362 = dma.hbm_to_vmem [thread:$0]  %s357, 128, %s360, %s349
        $region40: #{tpu_custom_call.1} parent=27 // pred_fallthru
          _
        // Predicated region
        $region41: #{tpu_custom_call.1} parent=27 // pred_check
          %p363 = pneg %p210
        $region42: #{tpu_custom_call.1} parent=27 // pred_check_branch
          %365 = sbr.rel (%p363) target = $region44
        $region43: #{tpu_custom_call.1} parent=27 // pred_region
          %s366 = sand.u32 %s22, 1
          %s367 = scalar_lea.sflag [#allocation13], %s366
          %s368 = sand.u32 %s200, 1
          %s369 = smul.addr %s368, 8
          %s370 = scalar_lea.vmem [#allocation14], %s369
          %s372 = ssub.s32 128, 128
          %373 = vsyncadd %s367, %s372
          %s374 = smul.addr %s30, 128
          %s375 = scalar_lea.hbm %s6, %s374
          %s377 = sshll.u32 %s370, 4
          %s378 = int_to_ptr.vmem [resolvable:$true] %s377
          %380 = dma.hbm_to_vmem [thread:$0]  %s375, 128, %s378, %s367
        $region44: #{tpu_custom_call.1} parent=27 // pred_fallthru
          _
      $region28: #{tpu_custom_call.1} parent=5 // pred_fallthru
        _
      %p381 = scmp.le.s32.totalorder 1, %s22
      %p382 = scmp.lt.s32.totalorder %s22, 5
      %p383 = pnand %p381, %p382
      %p384 = pneg %p383
      // Predicated region
      $region45: #{tpu_custom_call.1} parent=5 // pred_check
        _
      $region46: #{tpu_custom_call.1} parent=5 // pred_check_branch
        %386 = sbr.rel (%p383) target = $region48
      $region47: #{tpu_custom_call.1} parent=5 // pred_region
        %s387 = ssub.s32 %s22, 1
        // Predicated region
        $region49: #{tpu_custom_call.1} parent=47 // pred_check
          %p388 = pneg %p60
        $region50: #{tpu_custom_call.1} parent=47 // pred_check_branch
          %390 = sbr.rel (%p388) target = $region52
        $region51: #{tpu_custom_call.1} parent=47 // pred_region
          %391 = dma.done [#allocation4], 256
        $region52: #{tpu_custom_call.1} parent=47 // pred_fallthru
          _
        // Predicated region
        $region53: #{tpu_custom_call.1} parent=47 // pred_check
          %p392 = pneg %p86
        $region54: #{tpu_custom_call.1} parent=47 // pred_check_branch
          %394 = sbr.rel (%p392) target = $region56
        $region55: #{tpu_custom_call.1} parent=47 // pred_region
          %395 = dma.done [#allocation7], 256
        $region56: #{tpu_custom_call.1} parent=47 // pred_fallthru
          _
        // Predicated region
        $region57: #{tpu_custom_call.1} parent=47 // pred_check
          %p396 = pneg %p112
        $region58: #{tpu_custom_call.1} parent=47 // pred_check_branch
          %398 = sbr.rel (%p396) target = $region60
        $region59: #{tpu_custom_call.1} parent=47 // pred_region
          %399 = dma.done [#allocation7], 256
        $region60: #{tpu_custom_call.1} parent=47 // pred_fallthru
          _
        %s400 = sand.u32 %s27, 1
        %s401 = scalar_lea.sflag [#allocation10], %s400
        %s402 = sand.u32 %s125, 1
        %s403 = smul.addr %s402, 8
        %s404 = scalar_lea.vmem [#allocation9], %s403
        // Predicated region
        $region61: #{tpu_custom_call.1} parent=47 // pred_check
          %p405 = pneg %p138
        $region62: #{tpu_custom_call.1} parent=47 // pred_check_branch
          %407 = sbr.rel (%p405) target = $region64
        $region63: #{tpu_custom_call.1} parent=47 // pred_region
          %408 = dma.done %s401, 128
        $region64: #{tpu_custom_call.1} parent=47 // pred_fallthru
          _
        %s409 = sand.u32 %s27, 1
        %s410 = scalar_lea.sflag [#allocation10], %s409
        %s411 = sand.u32 %s151, 1
        %s412 = smul.addr %s411, 8
        %s413 = scalar_lea.vmem [#allocation11], %s412
        // Predicated region
        $region65: #{tpu_custom_call.1} parent=47 // pred_check
          %p414 = pneg %p164
        $region66: #{tpu_custom_call.1} parent=47 // pred_check_branch
          %416 = sbr.rel (%p414) target = $region68
        $region67: #{tpu_custom_call.1} parent=47 // pred_region
          %417 = dma.done %s410, 128
        $region68: #{tpu_custom_call.1} parent=47 // pred_fallthru
          _
        %s418 = sand.u32 %s27, 1
        %s419 = scalar_lea.sflag [#allocation13], %s418
        %s420 = sand.u32 %s177, 1
        %s421 = smul.addr %s420, 8
        %s422 = scalar_lea.vmem [#allocation12], %s421
        // Predicated region
        $region69: #{tpu_custom_call.1} parent=47 // pred_check
          %p423 = pneg %p190
        $region70: #{tpu_custom_call.1} parent=47 // pred_check_branch
          %425 = sbr.rel (%p423) target = $region72
        $region71: #{tpu_custom_call.1} parent=47 // pred_region
          %426 = dma.done %s419, 128
        $region72: #{tpu_custom_call.1} parent=47 // pred_fallthru
          _
        %s427 = sand.u32 %s27, 1
        %s428 = scalar_lea.sflag [#allocation13], %s427
        %s429 = sand.u32 %s203, 1
        %s430 = smul.addr %s429, 8
        %s431 = scalar_lea.vmem [#allocation14], %s430
        // Predicated region
        $region73: #{tpu_custom_call.1} parent=47 // pred_check
          %p432 = pneg %p216
        $region74: #{tpu_custom_call.1} parent=47 // pred_check_branch
          %434 = sbr.rel (%p432) target = $region76
        $region75: #{tpu_custom_call.1} parent=47 // pred_region
          %435 = dma.done %s428, 128
        $region76: #{tpu_custom_call.1} parent=47 // pred_fallthru
          _
        %p436 = pneg %p60
        %p437 = pneg %p57
        %p438 = pneg %p86
        %p439 = pneg %p83
        %p440 = pneg %p112
        %p441 = pneg %p109
        %s442 = sand.u32 %s27, 1
        %s443 = scalar_lea.sflag [#allocation10], %s442
        %s444 = sand.u32 %s125, 1
        %s445 = smul.addr %s444, 8
        %s446 = scalar_lea.vmem [#allocation9], %s445
        %p447 = pneg %p138
        %p448 = pneg %p135
        %s449 = sand.u32 %s27, 1
        %s450 = scalar_lea.sflag [#allocation10], %s449
        %s451 = sand.u32 %s151, 1
        %s452 = smul.addr %s451, 8
        %s453 = scalar_lea.vmem [#allocation11], %s452
        %p454 = pneg %p164
        %p455 = pneg %p161
        %s456 = sand.u32 %s27, 1
        %s457 = scalar_lea.sflag [#allocation13], %s456
        %s458 = sand.u32 %s177, 1
        %s459 = smul.addr %s458, 8
        %s460 = scalar_lea.vmem [#allocation12], %s459
        %p461 = pneg %p190
        %p462 = pneg %p187
        %s463 = sand.u32 %s27, 1
        %s464 = scalar_lea.sflag [#allocation13], %s463
        %s465 = sand.u32 %s203, 1
        %s466 = smul.addr %s465, 8
        %s467 = scalar_lea.vmem [#allocation14], %s466
        %p468 = pneg %p216
        %p469 = pneg %p213
        %p470 = pneg %p242
        %p471 = pneg %p239
        %s472 = smul.u32 2, %s31
        %s473 = smul.u32 2, %s31
        %s474 = smul.u32 2, %s31
        %s475 = smul.u32 2, %s31
        %p477 = scmp.eq.s32.totalorder %s32, 0
        // Predicated region
        $region77: #{tpu_custom_call.1} parent=47 // pred_check
          %p478 = pneg %p477
        $region78: #{tpu_custom_call.1} parent=47 // pred_check_branch
          %480 = sbr.rel (%p478) target = $region80
        $region79: #{tpu_custom_call.1} parent=47 // pred_region
          %vm481 = vcmask 261120
          %482 = vst.msk [vmem:[#allocation2] sm:$0xff] %vm481, 0.0
          %483 = vst.msk [vmem:[#allocation2 + $0x8] sm:$0xff] %vm481, 0.0
        $region80: #{tpu_custom_call.1} parent=47 // pred_fallthru
          _
        %v484 = vld [vmem:[#allocation3] sm:$0xff]
        %v485 = vld [vmem:[#allocation3 + $0x8] sm:$0xff]
        %v486 = vpack.c.bf16 %v485, %v484
        %v487 = vld [vmem:[#allocation6] sm:$0xff]
        %v488 = vld [vmem:[#allocation6 + $0x8] sm:$0xff]
        %v489 = vpack.c.bf16 %v488, %v487
        %v490 = vld [vmem:[#allocation8] sm:$0xff]
        %v491 = vld [vmem:[#allocation8 + $0x8] sm:$0xff]
        %v492 = vpack.c.bf16 %v491, %v490
        %v493 = vld [vmem:[%s404] sm:$0xff]
        %v494 = vpack.c.bf16 %v493, %v493
        %v495 = vld [vmem:[%s413] sm:$0xff]
        %v496 = vpack.c.bf16 %v495, %v495
        %v497 = vld [vmem:[%s422] sm:$0xff]
        %v498 = vpack.c.bf16 %v497, %v497
        %v499 = vld [vmem:[%s431] sm:$0xff]
        %v500 = vpack.c.bf16 %v499, %v499
        %vm501 = vcmask 261120
        %v503 = vsel %vm501, %v486, 0
        %v506 = vsel %vm501, %v494, 0
        %508 = vmatprep.subr.bf16.mxu0 0
        %509 = vmatpush1.bf16.xpose.msra.mxu0 %v506
        %510 = vmatprep.subr.bf16.mxu0 0
        %511 = vmatpush1.bf16.xpose.msra.mxu0 0
        %512 = vmatprep.subr.bf16.mxu0 0
        %513 = vmatpush1.bf16.xpose.msra.mxu0 0
        %514 = vmatprep.subr.bf16.mxu0 0
        %515 = vmatpush1.bf16.xpose.msra.mxu0 0
        %516 = vmatprep.subr.bf16.mxu0 0
        %517 = vmatpush1.bf16.xpose.msra.mxu0 0
        %518 = vmatprep.subr.bf16.mxu0 0
        %519 = vmatpush1.bf16.xpose.msra.mxu0 0
        %520 = vmatprep.subr.bf16.mxu0 0
        %521 = vmatpush1.bf16.xpose.msra.mxu0 0
        %522 = vmatprep.subr.bf16.mxu0 0
        %523 = vmatpush1.bf16.xpose.msra.mxu0 0
        %524 = vmatprep.subr.bf16.mxu0 0
        %525 = vmatpush1.bf16.xpose.msra.mxu0 0
        %526 = vmatprep.subr.bf16.mxu0 0
        %527 = vmatpush1.bf16.xpose.msra.mxu0 0
        %528 = vmatprep.subr.bf16.mxu0 0
        %529 = vmatpush1.bf16.xpose.msra.mxu0 0
        %530 = vmatprep.subr.bf16.mxu0 0
        %531 = vmatpush1.bf16.xpose.msra.mxu0 0
        %532 = vmatprep.subr.bf16.mxu0 0
        %533 = vmatpush1.bf16.xpose.msra.mxu0 0
        %534 = vmatprep.subr.bf16.mxu0 0
        %535 = vmatpush1.bf16.xpose.msra.mxu0 0
        %536 = vmatprep.subr.bf16.mxu0 0
        %537 = vmatpush1.bf16.xpose.msra.mxu0 0
        %538 = vmatprep.subr.bf16.mxu0 0
        %539 = vmatpush1.bf16.xpose.msra.mxu0 0
        %540 = vmatprep.mubr.bf16.mxu0 0
        %541 = vmatmul.mubr.bf16.gmra.mrb[0].mxu0 %v503
        %v542 = vpop.f32.mrb[0].mxu0
        %v543 = vadd.f32 0.0, %v542
        %v544 = vpop.f32.mrb[0].mxu0
        %v545 = vpop.f32.mrb[0].mxu0
        %v546 = vadd.f32 0.0, %v545
        %v547 = vpop.f32.mrb[0].mxu0
        %548 = vdwg.mxu0
        %v550 = vsel %vm501, %v489, 0
        %v553 = vsel %vm501, %v496, 0
        %555 = vmatprep.subr.bf16.mxu0 0
        %556 = vmatpush1.bf16.xpose.msra.mxu0 %v553
        %557 = vmatprep.subr.bf16.mxu0 0
        %558 = vmatpush1.bf16.xpose.msra.mxu0 0
        %559 = vmatprep.subr.bf16.mxu0 0
        %560 = vmatpush1.bf16.xpose.msra.mxu0 0
        %561 = vmatprep.subr.bf16.mxu0 0
        %562 = vmatpush1.bf16.xpose.msra.mxu0 0
        %563 = vmatprep.subr.bf16.mxu0 0
        %564 = vmatpush1.bf16.xpose.msra.mxu0 0
        %565 = vmatprep.subr.bf16.mxu0 0
        %566 = vmatpush1.bf16.xpose.msra.mxu0 0
        %567 = vmatprep.subr.bf16.mxu0 0
        %568 = vmatpush1.bf16.xpose.msra.mxu0 0
        %569 = vmatprep.subr.bf16.mxu0 0
        %570 = vmatpush1.bf16.xpose.msra.mxu0 0
        %571 = vmatprep.subr.bf16.mxu0 0
        %572 = vmatpush1.bf16.xpose.msra.mxu0 0
        %573 = vmatprep.subr.bf16.mxu0 0
        %574 = vmatpush1.bf16.xpose.msra.mxu0 0
        %575 = vmatprep.subr.bf16.mxu0 0
        %576 = vmatpush1.bf16.xpose.msra.mxu0 0
        %577 = vmatprep.subr.bf16.mxu0 0
        %578 = vmatpush1.bf16.xpose.msra.mxu0 0
        %579 = vmatprep.subr.bf16.mxu0 0
        %580 = vmatpush1.bf16.xpose.msra.mxu0 0
        %581 = vmatprep.subr.bf16.mxu0 0
        %582 = vmatpush1.bf16.xpose.msra.mxu0 0
        %583 = vmatprep.subr.bf16.mxu0 0
        %584 = vmatpush1.bf16.xpose.msra.mxu0 0
        %585 = vmatprep.subr.bf16.mxu0 0
        %586 = vmatpush1.bf16.xpose.msra.mxu0 0
        %587 = vmatprep.mubr.bf16.mxu0 0
        %588 = vmatmul.mubr.bf16.gmra.mrb[0].mxu0 %v550
        %v589 = vpop.f32.mrb[0].mxu0
        %v590 = vadd.f32 0.0, %v589
        %v591 = vpop.f32.mrb[0].mxu0
        %v592 = vpop.f32.mrb[0].mxu0
        %v593 = vadd.f32 0.0, %v592
        %v594 = vpop.f32.mrb[0].mxu0
        %595 = vdwg.mxu0
        %v597 = vsel %vm501, %v492, 0
        %v600 = vsel %vm501, %v498, 0
        %602 = vmatprep.subr.bf16.mxu0 0
        %603 = vmatpush1.bf16.xpose.msra.mxu0 %v600
        %604 = vmatprep.subr.bf16.mxu0 0
        %605 = vmatpush1.bf16.xpose.msra.mxu0 0
        %606 = vmatprep.subr.bf16.mxu0 0
        %607 = vmatpush1.bf16.xpose.msra.mxu0 0
        %608 = vmatprep.subr.bf16.mxu0 0
        %609 = vmatpush1.bf16.xpose.msra.mxu0 0
        %610 = vmatprep.subr.bf16.mxu0 0
        %611 = vmatpush1.bf16.xpose.msra.mxu0 0
        %612 = vmatprep.subr.bf16.mxu0 0
        %613 = vmatpush1.bf16.xpose.msra.mxu0 0
        %614 = vmatprep.subr.bf16.mxu0 0
        %615 = vmatpush1.bf16.xpose.msra.mxu0 0
        %616 = vmatprep.subr.bf16.mxu0 0
        %617 = vmatpush1.bf16.xpose.msra.mxu0 0
        %618 = vmatprep.subr.bf16.mxu0 0
        %619 = vmatpush1.bf16.xpose.msra.mxu0 0
        %620 = vmatprep.subr.bf16.mxu0 0
        %621 = vmatpush1.bf16.xpose.msra.mxu0 0
        %622 = vmatprep.subr.bf16.mxu0 0
        %623 = vmatpush1.bf16.xpose.msra.mxu0 0
        %624 = vmatprep.subr.bf16.mxu0 0
        %625 = vmatpush1.bf16.xpose.msra.mxu0 0
        %626 = vmatprep.subr.bf16.mxu0 0
        %627 = vmatpush1.bf16.xpose.msra.mxu0 0
        %628 = vmatprep.subr.bf16.mxu0 0
        %629 = vmatpush1.bf16.xpose.msra.mxu0 0
        %630 = vmatprep.subr.bf16.mxu0 0
        %631 = vmatpush1.bf16.xpose.msra.mxu0 0
        %632 = vmatprep.subr.bf16.mxu0 0
        %633 = vmatpush1.bf16.xpose.msra.mxu0 0
        %634 = vmatprep.mubr.bf16.mxu0 0
        %635 = vmatmul.mubr.bf16.gmra.mrb[0].mxu0 %v597
        %v636 = vpop.f32.mrb[0].mxu0
        %v637 = vadd.f32 0.0, %v636
        %v638 = vpop.f32.mrb[0].mxu0
        %v639 = vpop.f32.mrb[0].mxu0
        %v640 = vadd.f32 0.0, %v639
        %v641 = vpop.f32.mrb[0].mxu0
        %642 = vdwg.mxu0
        %v643 = vpack.c.bf16 %v543, %v543
        %v644 = vpack.c.bf16 %v546, %v546
        %v645 = vpack.c.bf16 %v590, %v590
        %v646 = vpack.c.bf16 %v593, %v593
        %v647 = vpack.c.bf16 %v637, %v637
        %v648 = vpack.c.bf16 %v640, %v640
        %vm649 = vcmask 64512
        %v651 = vsel %vm649, %v643, 0
        %v654 = vsel %vm649, %v645, 0
        %656 = vmatprep.subr.bf16.mxu0 0
        %657 = vmatpush1.bf16.xpose.msra.mxu0 %v654
        %658 = vmatprep.subr.bf16.mxu0 0
        %659 = vmatpush1.bf16.xpose.msra.mxu0 0
        %660 = vmatprep.subr.bf16.mxu0 0
        %661 = vmatpush1.bf16.xpose.msra.mxu0 0
        %662 = vmatprep.subr.bf16.mxu0 0
        %663 = vmatpush1.bf16.xpose.msra.mxu0 0
        %664 = vmatprep.subr.bf16.mxu0 0
        %665 = vmatpush1.bf16.xpose.msra.mxu0 0
        %666 = vmatprep.subr.bf16.mxu0 0
        %667 = vmatpush1.bf16.xpose.msra.mxu0 0
        %668 = vmatprep.subr.bf16.mxu0 0
        %669 = vmatpush1.bf16.xpose.msra.mxu0 0
        %670 = vmatprep.subr.bf16.mxu0 0
        %671 = vmatpush1.bf16.xpose.msra.mxu0 0
        %672 = vmatprep.subr.bf16.mxu0 0
        %673 = vmatpush1.bf16.xpose.msra.mxu0 0
        %674 = vmatprep.subr.bf16.mxu0 0
        %675 = vmatpush1.bf16.xpose.msra.mxu0 0
        %676 = vmatprep.subr.bf16.mxu0 0
        %677 = vmatpush1.bf16.xpose.msra.mxu0 0
        %678 = vmatprep.subr.bf16.mxu0 0
        %679 = vmatpush1.bf16.xpose.msra.mxu0 0
        %680 = vmatprep.subr.bf16.mxu0 0
        %681 = vmatpush1.bf16.xpose.msra.mxu0 0
        %682 = vmatprep.subr.bf16.mxu0 0
        %683 = vmatpush1.bf16.xpose.msra.mxu0 0
        %684 = vmatprep.subr.bf16.mxu0 0
        %685 = vmatpush1.bf16.xpose.msra.mxu0 0
        %686 = vmatprep.subr.bf16.mxu0 0
        %687 = vmatpush1.bf16.xpose.msra.mxu0 0
        %688 = vmatprep.mubr.bf16.mxu0 0
        %689 = vmatmul.mubr.bf16.gmra.mrb[0].mxu0 %v651
        %v690 = vpop.f32.mrb[0].mxu0
        %v691 = vadd.f32 0.0, %v690
        %v692 = vpop.f32.mrb[0].mxu0
        %v693 = vpop.f32.mrb[0].mxu0
        %v694 = vpop.f32.mrb[0].mxu0
        %695 = vdwg.mxu0
        %v697 = vsel %vm649, %v644, 0
        %v700 = vsel %vm649, %v646, 0
        %702 = vmatprep.subr.bf16.mxu0 0
        %703 = vmatpush1.bf16.xpose.msra.mxu0 %v700
        %704 = vmatprep.subr.bf16.mxu0 0
        %705 = vmatpush1.bf16.xpose.msra.mxu0 0
        %706 = vmatprep.subr.bf16.mxu0 0
        %707 = vmatpush1.bf16.xpose.msra.mxu0 0
        %708 = vmatprep.subr.bf16.mxu0 0
        %709 = vmatpush1.bf16.xpose.msra.mxu0 0
        %710 = vmatprep.subr.bf16.mxu0 0
        %711 = vmatpush1.bf16.xpose.msra.mxu0 0
        %712 = vmatprep.subr.bf16.mxu0 0
        %713 = vmatpush1.bf16.xpose.msra.mxu0 0
        %714 = vmatprep.subr.bf16.mxu0 0
        %715 = vmatpush1.bf16.xpose.msra.mxu0 0
        %716 = vmatprep.subr.bf16.mxu0 0
        %717 = vmatpush1.bf16.xpose.msra.mxu0 0
        %718 = vmatprep.subr.bf16.mxu0 0
        %719 = vmatpush1.bf16.xpose.msra.mxu0 0
        %720 = vmatprep.subr.bf16.mxu0 0
        %721 = vmatpush1.bf16.xpose.msra.mxu0 0
        %722 = vmatprep.subr.bf16.mxu0 0
        %723 = vmatpush1.bf16.xpose.msra.mxu0 0
        %724 = vmatprep.subr.bf16.mxu0 0
        %725 = vmatpush1.bf16.xpose.msra.mxu0 0
        %726 = vmatprep.subr.bf16.mxu0 0
        %727 = vmatpush1.bf16.xpose.msra.mxu0 0
        %728 = vmatprep.subr.bf16.mxu0 0
        %729 = vmatpush1.bf16.xpose.msra.mxu0 0
        %730 = vmatprep.subr.bf16.mxu0 0
        %731 = vmatpush1.bf16.xpose.msra.mxu0 0
        %732 = vmatprep.subr.bf16.mxu0 0
        %733 = vmatpush1.bf16.xpose.msra.mxu0 0
        %734 = vmatprep.mubr.bf16.mxu0 0
        %735 = vmatmul.mubr.bf16.gmra.mrb[0].mxu0 %v697
        %v736 = vpop.f32.mrb[0].mxu0
        %v737 = vadd.f32 0.0, %v736
        %v738 = vpop.f32.mrb[0].mxu0
        %v739 = vpop.f32.mrb[0].mxu0
        %v740 = vpop.f32.mrb[0].mxu0
        %741 = vdwg.mxu0
        %v742 = vsel %vm649, %v691, -inf
        %743 = vmax.xlane.f32.xlu0 %v742
        %v744 = vpop.xlane.xlu0 %743
        %v745 = vsel %vm649, %v737, -inf
        %746 = vmax.xlane.f32.xlu0 %v745
        %v747 = vpop.xlane.xlu0 %746
        %v748 = vsub.f32 %v691, %v744
        %v749 = vsub.f32 %v737, %v747
        %v750 = vmul.f32 %v748, 1.442695
        %v751 = vpow.pop %v750
        %v752 = vmul.f32 %v749, 1.442695
        %v753 = vpow.pop %v752
        %v754 = vsel %vm649, %v751, 0.0
        %755 = vadd.xlane.f32.xlu0 %v754
        %v756 = vpop.xlane.xlu0 %755
        %v757 = vsel %vm649, %v753, 0.0
        %758 = vadd.xlane.f32.xlu0 %v757
        %v759 = vpop.xlane.xlu0 %758
        %v760 = vpack.c.bf16 %v751, %v751
        %v761 = vpack.c.bf16 %v753, %v753
        %v763 = vsel %vm649, %v760, 0
        %vm765 = vcmask 1043456
        %v767 = vsel %vm765, %v647, 0
        %769 = vmatprep.subr.bf16.mxu0 0
        %770 = vmatpush1.bf16.msra.mxu0 %v767
        %771 = vmatprep.subr.bf16.mxu0 0
        %772 = vmatpush1.bf16.msra.mxu0 0
        %773 = vmatprep.subr.bf16.mxu0 0
        %774 = vmatpush1.bf16.msra.mxu0 0
        %775 = vmatprep.subr.bf16.mxu0 0
        %776 = vmatpush1.bf16.msra.mxu0 0
        %777 = vmatprep.subr.bf16.mxu0 0
        %778 = vmatpush1.bf16.msra.mxu0 0
        %779 = vmatprep.subr.bf16.mxu0 0
        %780 = vmatpush1.bf16.msra.mxu0 0
        %781 = vmatprep.subr.bf16.mxu0 0
        %782 = vmatpush1.bf16.msra.mxu0 0
        %783 = vmatprep.subr.bf16.mxu0 0
        %784 = vmatpush1.bf16.msra.mxu0 0
        %785 = vmatprep.subr.bf16.mxu0 0
        %786 = vmatpush1.bf16.msra.mxu0 0
        %787 = vmatprep.subr.bf16.mxu0 0
        %788 = vmatpush1.bf16.msra.mxu0 0
        %789 = vmatprep.subr.bf16.mxu0 0
        %790 = vmatpush1.bf16.msra.mxu0 0
        %791 = vmatprep.subr.bf16.mxu0 0
        %792 = vmatpush1.bf16.msra.mxu0 0
        %793 = vmatprep.subr.bf16.mxu0 0
        %794 = vmatpush1.bf16.msra.mxu0 0
        %795 = vmatprep.subr.bf16.mxu0 0
        %796 = vmatpush1.bf16.msra.mxu0 0
        %797 = vmatprep.subr.bf16.mxu0 0
        %798 = vmatpush1.bf16.msra.mxu0 0
        %799 = vmatprep.subr.bf16.mxu0 0
        %800 = vmatpush1.bf16.msra.mxu0 0
        %801 = vmatprep.mubr.bf16.mxu0 0
        %802 = vmatmul.mubr.bf16.gmra.mrb[0].mxu0 %v763
        %v803 = vpop.f32.mrb[0].mxu0
        %v804 = vadd.f32 0.0, %v803
        %v805 = vpop.f32.mrb[0].mxu0
        %v806 = vpop.f32.mrb[0].mxu0
        %v807 = vpop.f32.mrb[0].mxu0
        %808 = vdwg.mxu0
        %v810 = vsel %vm649, %v761, 0
        %v813 = vsel %vm765, %v648, 0
        %815 = vmatprep.subr.bf16.mxu0 0
        %816 = vmatpush1.bf16.msra.mxu0 %v813
        %817 = vmatprep.subr.bf16.mxu0 0
        %818 = vmatpush1.bf16.msra.mxu0 0
        %819 = vmatprep.subr.bf16.mxu0 0
        %820 = vmatpush1.bf16.msra.mxu0 0
        %821 = vmatprep.subr.bf16.mxu0 0
        %822 = vmatpush1.bf16.msra.mxu0 0
        %823 = vmatprep.subr.bf16.mxu0 0
        %824 = vmatpush1.bf16.msra.mxu0 0
        %825 = vmatprep.subr.bf16.mxu0 0
        %826 = vmatpush1.bf16.msra.mxu0 0
        %827 = vmatprep.subr.bf16.mxu0 0
        %828 = vmatpush1.bf16.msra.mxu0 0
        %829 = vmatprep.subr.bf16.mxu0 0
        %830 = vmatpush1.bf16.msra.mxu0 0
        %831 = vmatprep.subr.bf16.mxu0 0
        %832 = vmatpush1.bf16.msra.mxu0 0
        %833 = vmatprep.subr.bf16.mxu0 0
        %834 = vmatpush1.bf16.msra.mxu0 0
        %835 = vmatprep.subr.bf16.mxu0 0
        %836 = vmatpush1.bf16.msra.mxu0 0
        %837 = vmatprep.subr.bf16.mxu0 0
        %838 = vmatpush1.bf16.msra.mxu0 0
        %839 = vmatprep.subr.bf16.mxu0 0
        %840 = vmatpush1.bf16.msra.mxu0 0
        %841 = vmatprep.subr.bf16.mxu0 0
        %842 = vmatpush1.bf16.msra.mxu0 0
        %843 = vmatprep.subr.bf16.mxu0 0
        %844 = vmatpush1.bf16.msra.mxu0 0
        %845 = vmatprep.subr.bf16.mxu0 0
        %846 = vmatpush1.bf16.msra.mxu0 0
        %847 = vmatprep.mubr.bf16.mxu0 0
        %848 = vmatmul.mubr.bf16.gmra.mrb[0].mxu0 %v810
        %v849 = vpop.f32.mrb[0].mxu0
        %v850 = vadd.f32 0.0, %v849
        %v851 = vpop.f32.mrb[0].mxu0
        %v852 = vpop.f32.mrb[0].mxu0
        %v853 = vpop.f32.mrb[0].mxu0
        %854 = vdwg.mxu0
        %v855 = vrcp.pop %v756
        %v856 = vrcp.pop %v759
        %v857 = vmul.f32 %v804, %v855
        %v858 = vmul.f32 %v850, %v856
        %v859 = vpack.c.bf16 %v858, %v857
        %v860 = vld [vmem:[#allocation2] sm:$0xff]
        %v861 = vld [vmem:[#allocation2 + $0x8] sm:$0xff]
        %v863 = vsel %vm649, %v859, 0
        %v866 = vsel %vm765, %v500, 0
        %868 = vmatprep.subr.bf16.mxu0 0
        %869 = vmatpush1.bf16.msra.mxu0 %v866
        %870 = vmatprep.subr.bf16.mxu0 0
        %871 = vmatpush1.bf16.msra.mxu0 0
        %872 = vmatprep.subr.bf16.mxu0 0
        %873 = vmatpush1.bf16.msra.mxu0 0
        %874 = vmatprep.subr.bf16.mxu0 0
        %875 = vmatpush1.bf16.msra.mxu0 0
        %876 = vmatprep.subr.bf16.mxu0 0
        %877 = vmatpush1.bf16.msra.mxu0 0
        %878 = vmatprep.subr.bf16.mxu0 0
        %879 = vmatpush1.bf16.msra.mxu0 0
        %880 = vmatprep.subr.bf16.mxu0 0
        %881 = vmatpush1.bf16.msra.mxu0 0
        %882 = vmatprep.subr.bf16.mxu0 0
        %883 = vmatpush1.bf16.msra.mxu0 0
        %884 = vmatprep.subr.bf16.mxu0 0
        %885 = vmatpush1.bf16.msra.mxu0 0
        %886 = vmatprep.subr.bf16.mxu0 0
        %887 = vmatpush1.bf16.msra.mxu0 0
        %888 = vmatprep.subr.bf16.mxu0 0
        %889 = vmatpush1.bf16.msra.mxu0 0
        %890 = vmatprep.subr.bf16.mxu0 0
        %891 = vmatpush1.bf16.msra.mxu0 0
        %892 = vmatprep.subr.bf16.mxu0 0
        %893 = vmatpush1.bf16.msra.mxu0 0
        %894 = vmatprep.subr.bf16.mxu0 0
        %895 = vmatpush1.bf16.msra.mxu0 0
        %896 = vmatprep.subr.bf16.mxu0 0
        %897 = vmatpush1.bf16.msra.mxu0 0
        %898 = vmatprep.subr.bf16.mxu0 0
        %899 = vmatpush1.bf16.msra.mxu0 0
        %900 = vmatprep.mubr.bf16.mxu0 0
        %901 = vmatmul.mubr.bf16.gmra.mrb[0].mxu0 %v863
        %v902 = vpop.f32.mrb[0].mxu0
        %v903 = vadd.f32 0.0, %v902
        %v904 = vpop.f32.mrb[0].mxu0
        %v905 = vpop.f32.mrb[0].mxu0
        %v906 = vadd.f32 0.0, %v905
        %v907 = vpop.f32.mrb[0].mxu0
        %908 = vdwg.mxu0
        %v909 = vadd.f32 %v860, %v903
        %v910 = vadd.f32 %v861, %v906
        %911 = vst.msk [vmem:[#allocation2] sm:$0xff] %vm501, %v909
        %912 = vst.msk [vmem:[#allocation2 + $0x8] sm:$0xff] %vm501, %v910
        %p913 = scmp.eq.s32.totalorder %s32, 3
        // Predicated region
        $region81: #{tpu_custom_call.1} parent=47 // pred_check
          %p914 = pneg %p913
        $region82: #{tpu_custom_call.1} parent=47 // pred_check_branch
          %916 = sbr.rel (%p914) target = $region84
        $region83: #{tpu_custom_call.1} parent=47 // pred_region
          %v917 = vld [vmem:[#allocation2] sm:$0xff]
          %v918 = vld [vmem:[#allocation2 + $0x8] sm:$0xff]
          %919 = vst.msk [vmem:[#allocation15] sm:$0xff] %vm501, %v917
          %920 = vst.msk [vmem:[#allocation15 + $0x8] sm:$0xff] %vm501, %v918
        $region84: #{tpu_custom_call.1} parent=47 // pred_fallthru
          _
        // Predicated region
        $region85: #{tpu_custom_call.1} parent=47 // pred_check
          %p921 = pneg %p239
        $region86: #{tpu_custom_call.1} parent=47 // pred_check_branch
          %923 = sbr.rel (%p921) target = $region88
        $region87: #{tpu_custom_call.1} parent=47 // pred_region
          %s924 = smul.u32 2, %s31
          %s926 = ssub.s32 256, 256
          %927 = vsyncadd [#allocation5], %s926
          %s928 = smul.addr %s924, 128
          %s929 = scalar_lea.hbm %s7, %s928
          %s930 = sshll.u32 [#allocation15], 4
          %s931 = int_to_ptr.vmem [resolvable:$true] %s930
          %936 = dma.vmem_to_hbm [thread:$0]  %s931, 256, %s929, [#allocation5], 128, 128, 8
        $region88: #{tpu_custom_call.1} parent=47 // pred_fallthru
          _
        // Predicated region
        $region89: #{tpu_custom_call.1} parent=47 // pred_check
          %p937 = pneg %p239
        $region90: #{tpu_custom_call.1} parent=47 // pred_check_branch
          %939 = sbr.rel (%p937) target = $region92
        $region91: #{tpu_custom_call.1} parent=47 // pred_region
          %940 = dma.done [#allocation5], 256
        $region92: #{tpu_custom_call.1} parent=47 // pred_fallthru
          _
      $region48: #{tpu_custom_call.1} parent=5 // pred_fallthru
        _
      %p941 = scmp.le.s32.totalorder 2, %s22
      // Predicated region
      $region93: #{tpu_custom_call.1} parent=5 // pred_check
        %p942 = pneg %p941
      $region94: #{tpu_custom_call.1} parent=5 // pred_check_branch
        %944 = sbr.rel (%p942) target = $region96
      $region95: #{tpu_custom_call.1} parent=5 // pred_region
        %s945 = ssub.s32 %s22, 2
      $region96: #{tpu_custom_call.1} parent=5 // pred_fallthru
        _
    $region6: #{tpu_custom_call.1} parent=1 // loop_footer
      %s26 = sadd.s32 1, %s22
    $region7: #{tpu_custom_call.1} parent=1 // loop_footer_branch
      %21 = sbr.rel target = $region3
    $region8: #{tpu_custom_call.1} parent=1 // loop_exit
      _
    %946 = vsyncpa [#allocation4], 1
    %s947 = scalar_lea.sflag [#allocation4], 1
    %948 = vsyncpa %s947, 1
    %949 = vsyncpa [#allocation7], 1
    %950 = vsyncpa [#allocation10], 1
    %s951 = scalar_lea.sflag [#allocation10], 1
    %952 = vsyncpa %s951, 1
    %953 = vsyncpa [#allocation13], 1
    %s954 = scalar_lea.sflag [#allocation13], 1
    %955 = vsyncpa %s954, 1
    %956 = vsyncpa [#allocation5], 1
    %s957 = scalar_lea.sflag [#allocation5], 1
    %958 = vsyncpa %s957, 1

</llo_original>
